<compile_context>
chip_gen: v5e
topology: v5e:2x2
jax: 0.10.0
libtpu: 0.0.40
codegen_flags: <defaults>
</compile_context>

<pallas_src>
import itertools

import numpy as np
import jax
import jax.numpy as jnp
from jax import lax
from jax.experimental import pallas as pl
from jax.experimental.pallas import tpu as pltpu


# ----------------------------------------------------------------------------------
# Kernels
# ----------------------------------------------------------------------------------
def _dsv_main_kernel(w_ref, b_ref, x_ref, g1_ref, o_ref):
    """out = W2 @ x + g1 + (b1 + b2), f32 accumulation, lane-dense (Cout, tm) store."""
    acc = jnp.dot(w_ref[...], x_ref[...], preferred_element_type=jnp.float32)
    acc = acc + g1_ref[...].astype(jnp.float32) + b_ref[...]
    o_ref[...] = acc.astype(o_ref.dtype)


def _gconv_kernel(wg_ref, ag_ref, o_ref):
    """Parity-folded ConvTranspose3d: (8*Cout, 8*Cg) @ (8*Cg, tm)."""
    o_ref[...] = jnp.dot(wg_ref[...], ag_ref[...],
                         preferred_element_type=jnp.float32).astype(o_ref.dtype)


# ----------------------------------------------------------------------------------
# Tile-size selection
# ----------------------------------------------------------------------------------
def _pick_tm(S, requested, per_col_bytes, rest_grid=1, min_steps=4,
             vmem_budget=8 << 20):
    """Largest multiple-of-128 column tile that divides S (avoids a padding copy),
    capped by a VMEM budget and shrunk (when possible) so the total grid has at
    least `min_steps` steps for megacore load balance (v7x: 2 TCs)."""
    requested = max(128, (int(requested) // 128) * 128)
    cap = max(128, (int(vmem_budget // max(per_col_bytes, 1)) // 128) * 128)
    requested = min(requested, cap)
    divs = [t for t in range(128, min(requested, S) + 1, 128) if S % t == 0]
    if not divs:
        # no divisor: fall back to a padded tail column block
        return min(requested, ((S + 127) // 128) * 128)
    tm = divs[-1]
    while rest_grid * (S // tm) < min_steps and len(divs) > 1:
        divs.pop()
        tm = divs[-1]
    return tm


# ----------------------------------------------------------------------------------
# Forward pass
# ----------------------------------------------------------------------------------
def dsv_forward(g, x, w1, b1, w2, b2, *, tm=1024, out_dtype=None):
    """Pallas implementation of dsv_module.forward.

    g : (N, Cout, D, H, W)     -> ConvTranspose3d(Cout->Cout, k=3, s=2, p=1, out_pad=1)
    x : (N, Cin, 2D, 2H, 2W)   -> Conv3d(Cin->Cout, k=1)
    w1: (Cout, Cout, 3, 3, 3)   b1: (Cout,)   (PyTorch ConvTranspose3d weight layout)
    w2: (Cout, Cin, 1, 1, 1)    b2: (Cout,)   (PyTorch Conv3d weight layout)
    returns (N, Cout, 2D, 2H, 2W) in out_dtype (defaults to x.dtype).
    """
    N, Cg, D, H, W = g.shape
    _, Cin, Do, Ho, Wo = x.shape
    Cout = w1.shape[1]
    assert (Do, Ho, Wo) == (2 * D, 2 * H, 2 * W)
    out_dtype = x.dtype if out_dtype is None else out_dtype

    S = Do * Ho * Wo            # output voxels per (batch, channel) — native order
    M8 = N * D * H * W          # 2x2x2 output blocks (g-path GEMM columns)
    KO, KG = 8 * Cout, 8 * Cg

    # ---------------- g path: ConvTranspose3d folded to a dense (8Cout)x(8Cg) weight
    # Per-dim selector s1[parity, tap, kernel_idx] for stride-2/k=3/p=1/op=1:
    #   even output -> kernel idx 1 at the base voxel
    #   odd  output -> kernel idx 2 at the base voxel, kernel idx 0 at the next voxel
    s1 = np.zeros((2, 2, 3), np.float32)
    s1[0, 0, 1] = 1.0
    s1[1, 0, 2] = 1.0
    s1[1, 1, 0] = 1.0
    s1 = jnp.asarray(s1)
    # w1 is (ci, co, kd, kh, kw); Wg[(pd,ph,pw,co), (dd,dh,dw,ci)]
    wg = jnp.einsum('Pda,Qeb,Rfc,ioabc->PQRodefi', s1, s1, s1,
                    w1.astype(jnp.float32)).reshape(KO, KG)

    # Dense 2x2x2 taps of g (zero-padded one voxel at the high end).
    # TODO(synk): for deeper DSV levels (large Cout) generate the taps in-kernel from
    # a halo'd g block instead of materialising the 8x duplicate (negligible at Cout=2).
    g_pad = jnp.pad(g.astype(jnp.float32), ((0, 0), (0, 0), (0, 1), (0, 1), (0, 1)))
    taps = [g_pad[:, :, dd:dd + D, dh:dh + H, dw:dw + W]
            for dd, dh, dw in itertools.product(range(2), repeat=3)]
    ag = jnp.transpose(jnp.stack(taps, axis=0), (0, 2, 1, 3, 4, 5)).reshape(KG, M8)

    tm_g = _pick_tm(M8, 512, per_col_bytes=4 * (2 * KG + 4 * KO))
    Mp = ((M8 + tm_g - 1) // tm_g) * tm_g
    if Mp != M8:
        ag = jnp.pad(ag, ((0, 0), (0, Mp - M8)))

    gp = pl.pallas_call(
        _gconv_kernel,
        out_shape=jax.ShapeDtypeStruct((KO, Mp), jnp.float32),
        grid_spec=pltpu.PrefetchScalarGridSpec(
            num_scalar_prefetch=0,
            grid=(Mp // tm_g,),
            in_specs=[
                pl.BlockSpec((KO, KG), lambda i: (0, 0)),      # folded weight (resident)
                pl.BlockSpec((KG, tm_g), lambda i: (0, i)),    # g taps (lane-dense)
            ],
            out_specs=pl.BlockSpec((KO, tm_g), lambda i: (0, i)),
        ),
        compiler_params=pltpu.CompilerParams(
            dimension_semantics=("parallel",),
            vmem_limit_bytes=32 * 1024 * 1024,
        ),
    )(wg, ag)

    # TODO(synk): this (parity, co) x (n,d,h,w) -> NCDHW interleave over the small
    # Cout-channel g1 tensor is the only XLA layout pass left; it vanishes if the
    # consumer carries the parity-grouped layout end to end.
    g1 = gp[:, :M8].reshape(2, 2, 2, Cout, N, D, H, W)
    g1 = jnp.transpose(g1, (4, 3, 5, 0, 6, 1, 7, 2)).reshape(N, Cout, S)

    # ---------------- main fused kernel: out[n,:,s] = W2 @ x[n,:,s] + g1[n,:,s] + bias
    w2m = w2[:, :, 0, 0, 0].astype(jnp.float32)                 # (Cout, Cin)
    bias = (b1 + b2).astype(jnp.float32).reshape(Cout, 1)

    x_flat = x.reshape(N, Cin, S)                               # native layout, no copy
    per_col = (2 * Cin * x.dtype.itemsize                       # x tile (double-buffered)
               + 2 * Cout * 4                                   # g1 tile
               + 2 * Cout * jnp.dtype(out_dtype).itemsize)      # output tile
    tm_m = _pick_tm(S, tm, per_col_bytes=per_col, rest_grid=N)
    Sp = ((S + tm_m - 1) // tm_m) * tm_m
    if Sp != S:
        x_flat = jnp.pad(x_flat, ((0, 0), (0, 0), (0, Sp - S)))
        g1 = jnp.pad(g1, ((0, 0), (0, 0), (0, Sp - S)))

    out_flat = pl.pallas_call(
        _dsv_main_kernel,
        out_shape=jax.ShapeDtypeStruct((N, Cout, Sp), out_dtype),
        grid_spec=pltpu.PrefetchScalarGridSpec(
            num_scalar_prefetch=0,
            grid=(N, Sp // tm_m),
            in_specs=[
                pl.BlockSpec((Cout, Cin), lambda n, i: (0, 0)),          # 1x1 weight (resident)
                pl.BlockSpec((Cout, 1), lambda n, i: (0, 0)),            # fused bias (resident)
                pl.BlockSpec((None, Cin, tm_m), lambda n, i: (n, 0, i)),  # x, native layout
                pl.BlockSpec((None, Cout, tm_m), lambda n, i: (n, 0, i)),  # upsampled g
            ],
            out_specs=pl.BlockSpec((None, Cout, tm_m), lambda n, i: (n, 0, i)),  # lane-dense
        ),
        compiler_params=pltpu.CompilerParams(
            dimension_semantics=("parallel", "parallel"),
            vmem_limit_bytes=32 * 1024 * 1024,
        ),
    )(w2m, bias, x_flat, g1)

    out = out_flat if Sp == S else out_flat[:, :, :S]
    return out.reshape(N, Cout, Do, Ho, Wo)


# ----------------------------------------------------------------------------------
# Independent pure-JAX reference (lax conv with lhs_dilation)
# ----------------------------------------------------------------------------------
def dsv_reference(g, x, w1, b1, w2, b2):
    N, Cout, D, H, W = g.shape
    w1c = jnp.transpose(jnp.flip(w1, axis=(2, 3, 4)), (1, 0, 2, 3, 4))  # (O, I, 3,3,3)
    dn = lax.conv_dimension_numbers(g.shape, w1c.shape, ('NCDHW', 'OIDHW', 'NCDHW'))
    g1 = lax.conv_general_dilated(
        g, w1c, window_strides=(1, 1, 1), padding=[(1, 2)] * 3,
        lhs_dilation=(2, 2, 2), rhs_dilation=(1, 1, 1), dimension_numbers=dn)
    g1 = g1 + b1.reshape(1, Cout, 1, 1, 1)
    x1 = jnp.einsum('ncdhw,oc->nodhw', x, w2[:, :, 0, 0, 0]) + b2.reshape(1, Cout, 1, 1, 1)
    return g1 + x1


if __name__ == "__main__":
    key = jax.random.PRNGKey(0)
    kg, kx, kw1, kb1, kw2, kb2 = jax.random.split(key, 6)

    # Shapes implied by AG_DSV_UNet.Dsv_Conv2: in_ch = filters[0] = 32, out_ch = 2.
    N, in_ch, out_ch, D, H, W = 2, 32, 2, 8, 8, 8
    g = jax.random.normal(kg, (N, out_ch, D, H, W), jnp.float32)
    x = jax.random.normal(kx, (N, in_ch, 2 * D, 2 * H, 2 * W), jnp.float32)

    # deterministic synthetic parameters (shapes from dsv_module.__init__)
    w1 = 0.1 * jax.random.normal(kw1, (out_ch, out_ch, 3, 3, 3), jnp.float32)
    b1 = 0.1 * jax.random.normal(kb1, (out_ch,), jnp.float32)
    w2 = 0.1 * jax.random.normal(kw2, (out_ch, in_ch, 1, 1, 1), jnp.float32)
    b2 = 0.1 * jax.random.normal(kb2, (out_ch,), jnp.float32)

    out = jax.jit(dsv_forward)(g, x, w1, b1, w2, b2)
    out = jax.block_until_ready(out)

    ref = dsv_reference(g, x, w1, b1, w2, b2)
    assert out.shape == (N, out_ch, 2 * D, 2 * H, 2 * W), out.shape
    err = float(jnp.max(jnp.abs(out - ref)))
    assert jnp.allclose(out, ref, atol=5e-2, rtol=5e-2), err
    print("KERNEL_OK")
</pallas_src>

<mosaic_0001>
module attributes {stable_mosaic.version = 11 : i64} {
  func.func @_gconv_kernel(%arg0: i32, %arg1: memref<16x16xf32, #tpu.memory_space<vmem>>, %arg2: memref<16x256xf32, #tpu.memory_space<vmem>>, %arg3: memref<16x256xf32, #tpu.memory_space<vmem>>) attributes {dimension_semantics = [#tpu.dimension_semantics<parallel>], iteration_bounds = array<i64: 4>, scalar_prefetch = 0 : i64, scratch_operands = 0 : i64, tpu.core_type = #tpu.core_type<tc>, window_params = [{pipeline_mode = #tpu.pipeline_mode<synchronous>, transform_indices = @transform_0, window_bounds = array<i64: 16, 16>}, {transform_indices = @transform_1, window_bounds = array<i64: 16, 256>}, {transform_indices = @transform_2, window_bounds = array<i64: 16, 256>}]} {
    %c0 = arith.constant 0 : index
    %c0_0 = arith.constant 0 : index
    %0 = vector.load %arg1[%c0, %c0_0] : memref<16x16xf32, #tpu.memory_space<vmem>>, vector<16x16xf32>
    %c0_1 = arith.constant 0 : index
    %c0_2 = arith.constant 0 : index
    %1 = vector.load %arg2[%c0_1, %c0_2] : memref<16x256xf32, #tpu.memory_space<vmem>>, vector<16x256xf32>
    %cst = arith.constant dense<0.000000e+00> : vector<16x256xf32>
    %2 = tpu.matmul %0, %1, %cst {dimension_numbers = #tpu.dot_dimension_numbers<[1], [0], [0], [1], [0, 0, 1, 1], [], []>} : vector<16x16xf32>, vector<16x256xf32>, vector<16x256xf32> -> vector<16x256xf32>
    %c0_3 = arith.constant 0 : index
    %c0_4 = arith.constant 0 : index
    %3 = vector.load %arg3[%c0_3, %c0_4] : memref<16x256xf32, #tpu.memory_space<vmem>>, vector<16x256xf32>
    tpu.vector_store %arg3[%c0_3, %c0_4], %2 {strides = array<i32>} : memref<16x256xf32, #tpu.memory_space<vmem>>, vector<16x256xf32>,
    return
  }
  func.func @transform_0(%arg0: i32) -> (i32, i32) {
    %c0_i32 = arith.constant 0 : i32
    %c0_i32_0 = arith.constant 0 : i32
    %c0_i32_1 = arith.constant 0 : i32
    return %c0_i32, %c0_i32_0 : i32, i32
  }
  func.func @transform_1(%arg0: i32) -> (i32, i32) {
    %c0_i32 = arith.constant 0 : i32
    %c0_i32_0 = arith.constant 0 : i32
    return %c0_i32, %arg0 : i32, i32
  }
  func.func @transform_2(%arg0: i32) -> (i32, i32) {
    %c0_i32 = arith.constant 0 : i32
    %c0_i32_0 = arith.constant 0 : i32
    return %c0_i32, %arg0 : i32, i32
  }
}

module attributes {stable_mosaic.version = 11 : i64} {
  func.func @_dsv_main_kernel(%arg0: i32, %arg1: i32, %arg2: memref<2x32xf32, #tpu.memory_space<vmem>>, %arg3: memref<2x1xf32, #tpu.memory_space<vmem>>, %arg4: memref<1x32x1024xf32, #tpu.memory_space<vmem>>, %arg5: memref<1x2x1024xf32, #tpu.memory_space<vmem>>, %arg6: memref<1x2x1024xf32, #tpu.memory_space<vmem>>) attributes {dimension_semantics = [#tpu.dimension_semantics<parallel>, #tpu.dimension_semantics<parallel>], iteration_bounds = array<i64: 2, 4>, scalar_prefetch = 0 : i64, scratch_operands = 0 : i64, tpu.core_type = #tpu.core_type<tc>, window_params = [{pipeline_mode = #tpu.pipeline_mode<synchronous>, transform_indices = @transform_0, window_bounds = array<i64: 2, 32>}, {pipeline_mode = #tpu.pipeline_mode<synchronous>, transform_indices = @transform_1, window_bounds = array<i64: 2, 1>}, {transform_indices = @transform_2, window_bounds = array<i64: 1, 32, 1024>}, {transform_indices = @transform_3, window_bounds = array<i64: 1, 2, 1024>}, {transform_indices = @transform_4, window_bounds = array<i64: 1, 2, 1024>}]} {
    %c0 = arith.constant 0 : index
    %c0_0 = arith.constant 0 : index
    %0 = vector.load %arg2[%c0, %c0_0] : memref<2x32xf32, #tpu.memory_space<vmem>>, vector<2x32xf32>
    %c0_1 = arith.constant 0 : index
    %c0_2 = arith.constant 0 : index
    %c0_3 = arith.constant 0 : index
    %1 = vector.load %arg4[%c0_1, %c0_2, %c0_3] : memref<1x32x1024xf32, #tpu.memory_space<vmem>>, vector<1x32x1024xf32>
    %2 = vector.shape_cast %1 : vector<1x32x1024xf32> to vector<32x1024xf32>
    %cst = arith.constant dense<0.000000e+00> : vector<2x1024xf32>
    %3 = tpu.matmul %0, %2, %cst {dimension_numbers = #tpu.dot_dimension_numbers<[1], [0], [0], [1], [0, 0, 1, 1], [], []>} : vector<2x32xf32>, vector<32x1024xf32>, vector<2x1024xf32> -> vector<2x1024xf32>
    %c0_4 = arith.constant 0 : index
    %c0_5 = arith.constant 0 : index
    %c0_6 = arith.constant 0 : index
    %4 = vector.load %arg5[%c0_4, %c0_5, %c0_6] : memref<1x2x1024xf32, #tpu.memory_space<vmem>>, vector<1x2x1024xf32>
    %5 = vector.shape_cast %4 : vector<1x2x1024xf32> to vector<2x1024xf32>
    %6 = arith.addf %3, %5 : vector<2x1024xf32>
    %c0_7 = arith.constant 0 : index
    %c0_8 = arith.constant 0 : index
    %7 = vector.load %arg3[%c0_7, %c0_8] : memref<2x1xf32, #tpu.memory_space<vmem>>, vector<2x1xf32>
    %8 = vector.broadcast %7 : vector<2x1xf32> to vector<2x1024xf32>
    %9 = arith.addf %6, %8 : vector<2x1024xf32>
    %c0_9 = arith.constant 0 : index
    %c0_10 = arith.constant 0 : index
    %c0_11 = arith.constant 0 : index
    %10 = vector.load %arg6[%c0_9, %c0_10, %c0_11] : memref<1x2x1024xf32, #tpu.memory_space<vmem>>, vector<1x2x1024xf32>
    %11 = vector.shape_cast %10 : vector<1x2x1024xf32> to vector<2x1024xf32>
    %12 = vector.shape_cast %9 : vector<2x1024xf32> to vector<1x2x1024xf32>
    tpu.vector_store %arg6[%c0_9, %c0_10, %c0_11], %12 {strides = array<i32>} : memref<1x2x1024xf32, #tpu.memory_space<vmem>>, vector<1x2x1024xf32>,
    return
  }
  func.func @transform_0(%arg0: i32, %arg1: i32) -> (i32, i32) {
    %c0_i32 = arith.constant 0 : i32
    %c0_i32_0 = arith.constant 0 : i32
    %c0_i32_1 = arith.constant 0 : i32
    return %c0_i32, %c0_i32_0 : i32, i32
  }
  func.func @transform_1(%arg0: i32, %arg1: i32) -> (i32, i32) {
    %c0_i32 = arith.constant 0 : i32
    %c0_i32_0 = arith.constant 0 : i32
    %c0_i32_1 = arith.constant 0 : i32
    return %c0_i32, %c0_i32_0 : i32, i32
  }
  func.func @transform_2(%arg0: i32, %arg1: i32) -> (i32, i32, i32) {
    %c0_i32 = arith.constant 0 : i32
    %c0_i32_0 = arith.constant 0 : i32
    return %arg0, %c0_i32, %arg1 : i32, i32, i32
  }
  func.func @transform_3(%arg0: i32, %arg1: i32) -> (i32, i32, i32) {
    %c0_i32 = arith.constant 0 : i32
    %c0_i32_0 = arith.constant 0 : i32
    return %arg0, %c0_i32, %arg1 : i32, i32, i32
  }
  func.func @transform_4(%arg0: i32, %arg1: i32) -> (i32, i32, i32) {
    %c0_i32 = arith.constant 0 : i32
    %c0_i32_0 = arith.constant 0 : i32
    return %arg0, %c0_i32, %arg1 : i32, i32, i32
  }
}

</mosaic_0001>

<llo_original>
// kernel: dsv_forward.2
$region0: #{dsv_forward.2}
  #allocation0 [shape = 'u32[]', space=smem, size = 0x4, offset = 0x4, fixed_abs, tag = 'smem constant byte address 0x4 - core index']
  #allocation1 [shape = 'u32[72,128]{1,0:T(1,128)}', space=vmem, size = 0x9000, scoped, tag = 'internal scratch']
  %s0 = inlined_call_operand.vmem [shape: f32[16,16], index: 0, kind: input, shape index: {}]
  %s1 = inlined_call_operand.vmem [shape: f32[16,1024], index: 1, kind: input, shape index: {}]
  %s2 = inlined_call_operand.vmem [shape: f32[16,1024], index: 2, kind: output, shape index: {}]
  %s3 = sld [smem:[#allocation0]]
  $region83: #{dsv_forward.2} parent=0
    _
  %s5 = ssub.s32 1, %s3
  %s6 = scalar_select 0, %s5, %s3
  $region1: #{dsv_forward.2} parent=0
    #allocation2 [shape = 'u8[32768]{0}', space=vmem, size = 0x8000, scoped, tag = 'input window, operand 1']
    #allocation3 [shape = 'u8[32768]{0}', space=vmem, size = 0x8000, scoped, tag = 'output window, operand 0']
    loop: start=0, step=1, limit=6
    $region2: #{dsv_forward.2} parent=1 // loop_pre_header
      _
    $region3: #{dsv_forward.2} parent=1 // loop_header
      %s8 = sphi 0, %s12
      %p9 = scmp.ge.s32.totalorder %s8, 6
      %s16 = sphi 0, %s16
      %s18 = sphi 0, %s16
      %s19 = sphi 0, %s18
      %s33 = sphi 0, %s19
      %s39 = sphi 0, %s41
      %s42 = sphi 0, %s39
      %s43 = sphi 0, %s42
      %s59 = sphi 0, %s43
      %s65 = sphi 0, %s67
      %s68 = sphi 0, %s65
      %s69 = sphi 0, %s68
      %s85 = sphi 0, %s69
    $region4: #{dsv_forward.2} parent=1 // loop_header_branch
      %11 = sbr.rel (%p9) target = $region8
    $region5: #{dsv_forward.2} parent=1 // loop_body
      %s13 = ssub.s32 %s8, 1
      %s14 = ssub.s32 %s8, 2
      %s15 = sadd.s32 %s8, 1
      %s17 = sadd.s32 %s16, 1
      %p20 = scmp.eq.s32.totalorder %s8, 3
      %p21 = scmp.ne.s32.totalorder %s16, %s18
      %p22 = scmp.eq.s32.totalorder %s8, 0
      %p23 = por %p21, %p22
      %p24 = scmp.ne.s32.totalorder %s16, %s18
      %p25 = scmp.eq.s32.totalorder %s13, 3
      %p26 = por %p24, %p25
      %p27 = scmp.ne.s32.totalorder %s18, %s19
      %p28 = scmp.eq.s32.totalorder %s13, 0
      %p29 = por %p27, %p28
      %p30 = scmp.ne.s32.totalorder %s18, %s19
      %p31 = scmp.eq.s32.totalorder %s14, 3
      %p32 = por %p30, %p31
      %p34 = scmp.ne.s32.totalorder %s19, %s33
      %p35 = scmp.eq.s32.totalorder %s14, 0
      %p36 = por %p34, %p35
      %s37 = ssub.s32 %s8, %s15
      %p38 = scmp.eq.s32.totalorder %s37, 0
      %s40 = sadd.s32 %s39, 1
      %s41 = scalar_select %p38, %s39, %s40
      %p44 = pneg %p38
      %p45 = scmp.eq.s32.totalorder %s8, 3
      %p46 = por %p44, %p45
      %p47 = scmp.ne.s32.totalorder %s39, %s42
      %p48 = scmp.eq.s32.totalorder %s8, 0
      %p49 = por %p47, %p48
      %p50 = scmp.ne.s32.totalorder %s39, %s42
      %p51 = scmp.eq.s32.totalorder %s13, 3
      %p52 = por %p50, %p51
      %p53 = scmp.ne.s32.totalorder %s42, %s43
      %p54 = scmp.eq.s32.totalorder %s13, 0
      %p55 = por %p53, %p54
      %p56 = scmp.ne.s32.totalorder %s42, %s43
      %p57 = scmp.eq.s32.totalorder %s14, 3
      %p58 = por %p56, %p57
      %p60 = scmp.ne.s32.totalorder %s43, %s59
      %p61 = scmp.eq.s32.totalorder %s14, 0
      %p62 = por %p60, %p61
      %s63 = ssub.s32 %s8, %s15
      %p64 = scmp.eq.s32.totalorder %s63, 0
      %s66 = sadd.s32 %s65, 1
      %s67 = scalar_select %p64, %s65, %s66
      %p70 = pneg %p64
      %p71 = scmp.eq.s32.totalorder %s8, 3
      %p72 = por %p70, %p71
      %p73 = scmp.ne.s32.totalorder %s65, %s68
      %p74 = scmp.eq.s32.totalorder %s8, 0
      %p75 = por %p73, %p74
      %p76 = scmp.ne.s32.totalorder %s65, %s68
      %p77 = scmp.eq.s32.totalorder %s13, 3
      %p78 = por %p76, %p77
      %p79 = scmp.ne.s32.totalorder %s68, %s69
      %p80 = scmp.eq.s32.totalorder %s13, 0
      %p81 = por %p79, %p80
      %p82 = scmp.ne.s32.totalorder %s68, %s69
      %p83 = scmp.eq.s32.totalorder %s14, 3
      %p84 = por %p82, %p83
      %p86 = scmp.ne.s32.totalorder %s69, %s85
      %p87 = scmp.eq.s32.totalorder %s14, 0
      %p88 = por %p86, %p87
      %p89 = scmp.le.s32.totalorder 1, %s8
      %p90 = scmp.lt.s32.totalorder %s8, 5
      %p91 = pnand %p89, %p90
      %p92 = pneg %p91
      // Predicated region
      $region9: #{dsv_forward.2} parent=5 // pred_check
        _
      $region10: #{dsv_forward.2} parent=5 // pred_check_branch
        %94 = sbr.rel (%p91) target = $region12
      $region11: #{dsv_forward.2} parent=5 // pred_region
        %s95 = ssub.s32 %s8, 1
        // Predicated region
        $region13: #{dsv_forward.2} parent=11 // pred_check
          %p96 = pneg %p29
        $region14: #{dsv_forward.2} parent=11 // pred_check_branch
          %98 = sbr.rel (%p96) target = $region16
        $region15: #{dsv_forward.2} parent=11 // pred_region
          _
        $region16: #{dsv_forward.2} parent=11 // pred_fallthru
          _
      $region12: #{dsv_forward.2} parent=5 // pred_fallthru
        _
      %p99 = scmp.lt.s32.totalorder %s8, 4
      // Predicated region
      $region17: #{dsv_forward.2} parent=5 // pred_check
        %p100 = pneg %p99
      $region18: #{dsv_forward.2} parent=5 // pred_check_branch
        %102 = sbr.rel (%p100) target = $region20
      $region19: #{dsv_forward.2} parent=5 // pred_region
        // Predicated region
        $region21: #{dsv_forward.2} parent=19 // pred_check
          %p103 = pneg %p49
        $region22: #{dsv_forward.2} parent=19 // pred_check_branch
          %105 = sbr.rel (%p103) target = $region24
        $region23: #{dsv_forward.2} parent=19 // pred_region
          %s106 = sand.u32 %s39, 1
          %s107 = sand.u32 %s39, 1
          %s108 = smul.addr %s107, 32
          %s109 = scalar_lea.vmem [#allocation2], %s108
          %s110 = smul.u32 2, %s8
          %s111 = smul.addr %s110, 8
          %s112 = scalar_lea.vmem %s1, %s111
          // Predicated region
          $region25: #{dsv_forward.2} parent=23 // pred_check
            _
          $region26: #{dsv_forward.2} parent=23 // pred_check_branch
            %114 = sbr.rel (0) target = $region28
          $region27: #{dsv_forward.2} parent=23 // pred_region
            // Predicated region
            $region29: #{dsv_forward.2} parent=27 // pred_check
              _
            $region30: #{dsv_forward.2} parent=27 // pred_check_branch
              %116 = sbr.rel (0) target = $region32
            $region31: #{dsv_forward.2} parent=27 // pred_region
              loop: start=0, step=1, limit=1
              $region33: #{dsv_forward.2} parent=31 // loop_pre_header
                _
              $region34: #{dsv_forward.2} parent=31 // loop_header
                %s118 = sphi 0, %s122
                %p119 = scmp.ge.s32.totalorder %s118, 1
                %s123 = sphi %s112, %s112
                %s124 = sphi %s109, %s109
              $region35: #{dsv_forward.2} parent=31 // loop_header_branch
                %121 = sbr.rel (%p119) target = $region39
              $region36: #{dsv_forward.2} parent=31 // loop_body
                %v125 = vld [vmem:[%s123] sm:$0xff]
                %126 = vst [vmem:[%s124] sm:$0xff] %v125
                %v127 = vld [vmem:[%s123 + $0x8] sm:$0xff]
                %128 = vst [vmem:[%s124 + $0x8] sm:$0xff] %v127
                %v129 = vld [vmem:[%s123 + $0x40] sm:$0xff]
                %130 = vst [vmem:[%s124 + $0x10] sm:$0xff] %v129
                %v131 = vld [vmem:[%s123 + $0x48] sm:$0xff]
                %132 = vst [vmem:[%s124 + $0x18] sm:$0xff] %v131
              $region37: #{dsv_forward.2} parent=31 // loop_footer
                %s122 = sadd.s32 1, %s118
              $region38: #{dsv_forward.2} parent=31 // loop_footer_branch
                %117 = sbr.rel target = $region34
              $region39: #{dsv_forward.2} parent=31 // loop_exit
                _
            $region32: #{dsv_forward.2} parent=27 // pred_fallthru
              _
            // Predicated region
            $region40: #{dsv_forward.2} parent=27 // pred_check
              _
            $region41: #{dsv_forward.2} parent=27 // pred_check_branch
              %134 = sbr.rel target = $region43
            $region42: #{dsv_forward.2} parent=27 // pred_region
              _
            $region43: #{dsv_forward.2} parent=27 // pred_fallthru
              _
          $region28: #{dsv_forward.2} parent=23 // pred_fallthru
            _
          %135 = vnop
        $region24: #{dsv_forward.2} parent=19 // pred_fallthru
          _
      $region20: #{dsv_forward.2} parent=5 // pred_fallthru
        _
      %p136 = scmp.le.s32.totalorder 1, %s8
      %p137 = scmp.lt.s32.totalorder %s8, 5
      %p138 = pnand %p136, %p137
      %p139 = pneg %p138
      // Predicated region
      $region44: #{dsv_forward.2} parent=5 // pred_check
        _
      $region45: #{dsv_forward.2} parent=5 // pred_check_branch
        %141 = sbr.rel (%p138) target = $region47
      $region46: #{dsv_forward.2} parent=5 // pred_region
        %s142 = ssub.s32 %s8, 1
        %s143 = sand.u32 %s42, 1
        %s144 = sand.u32 %s42, 1
        %s145 = smul.addr %s144, 32
        %s146 = scalar_lea.vmem [#allocation2], %s145
        // Predicated region
        $region48: #{dsv_forward.2} parent=46 // pred_check
          %p147 = pneg %p55
        $region49: #{dsv_forward.2} parent=46 // pred_check_branch
          %149 = sbr.rel (%p147) target = $region51
        $region50: #{dsv_forward.2} parent=46 // pred_region
          _
        $region51: #{dsv_forward.2} parent=46 // pred_fallthru
          _
        %p150 = pneg %p29
        %p151 = pneg %p26
        %s152 = sand.u32 %s42, 1
        %s153 = sand.u32 %s42, 1
        %s154 = smul.addr %s153, 32
        %s155 = scalar_lea.vmem [#allocation2], %s154
        %p156 = pneg %p55
        %p157 = pneg %p52
        %p158 = pneg %p81
        %p159 = pneg %p78
        %s160 = sand.u32 %s68, 1
        %s161 = sand.u32 %s68, 1
        %s162 = smul.addr %s161, 32
        %s163 = scalar_lea.vmem [#allocation3], %s162
        %s164 = smul.u32 2, %s13
        %s165 = smul.u32 2, %s13
        %v166 = vld [vmem:[%s0] sm:$0xff]
        %v167 = vld [vmem:[%s0 + $0x8] sm:$0xff]
        %v168 = vld [vmem:[%s146] sm:$0xff]
        %v169 = vld [vmem:[%s146 + $0x8] sm:$0xff]
        %v170 = vld [vmem:[%s146 + $0x10] sm:$0xff]
        %v171 = vld [vmem:[%s146 + $0x18] sm:$0xff]
        %vm172 = vcmask 130048
        %v174 = vsel %vm172, %v166, 0
        %v177 = vsel %vm172, %v167, 0
        %179 = vmatpush.msra.mxu0 0.0
        %180 = vmatpush.msra.mxu0 0.0
        %181 = vmatpush.msra.mxu0 0.0
        %182 = vmatpush.msra.mxu0 0.0
        %183 = vmatpush.msra.mxu0 0.0
        %184 = vmatpush.msra.mxu0 0.0
        %185 = vmatpush.msra.mxu0 0.0
        %186 = vmatpush.msra.mxu0 0.0
        %187 = vmatpush.msra.mxu0 0.0
        %188 = vmatpush.msra.mxu0 0.0
        %189 = vmatpush.msra.mxu0 0.0
        %190 = vmatpush.msra.mxu0 0.0
        %191 = vmatpush.msra.mxu0 0.0
        %192 = vmatpush.msra.mxu0 0.0
        %193 = vmatpush.msra.mxu0 %v170
        %194 = vmatpush.msra.mxu0 %v168
        %195 = vmatmul.f32.gmra.mxu0 %v174
        %v196 = vpop.f32.mrf.mxu0
        %v197 = vadd.f32 0.0, %v196
        %198 = vmatmul.f32.gmra.mxu0 %v177
        %v199 = vpop.f32.mrf.mxu0
        %v200 = vadd.f32 0.0, %v199
        %201 = vdwg.mxu0
        %202 = vmatpush.msra.mxu0 0.0
        %203 = vmatpush.msra.mxu0 0.0
        %204 = vmatpush.msra.mxu0 0.0
        %205 = vmatpush.msra.mxu0 0.0
        %206 = vmatpush.msra.mxu0 0.0
        %207 = vmatpush.msra.mxu0 0.0
        %208 = vmatpush.msra.mxu0 0.0
        %209 = vmatpush.msra.mxu0 0.0
        %210 = vmatpush.msra.mxu0 0.0
        %211 = vmatpush.msra.mxu0 0.0
        %212 = vmatpush.msra.mxu0 0.0
        %213 = vmatpush.msra.mxu0 0.0
        %214 = vmatpush.msra.mxu0 0.0
        %215 = vmatpush.msra.mxu0 0.0
        %216 = vmatpush.msra.mxu0 %v171
        %217 = vmatpush.msra.mxu0 %v169
        %218 = vmatmul.f32.gmra.mxu0 %v174
        %v219 = vpop.f32.mrf.mxu0
        %v220 = vadd.f32 0.0, %v219
        %221 = vmatmul.f32.gmra.mxu0 %v177
        %v222 = vpop.f32.mrf.mxu0
        %v223 = vadd.f32 0.0, %v222
        %224 = vdwg.mxu0
        %225 = vst [vmem:[%s163] sm:$0xff] %v197
        %226 = vst [vmem:[%s163 + $0x8] sm:$0xff] %v220
        %227 = vst [vmem:[%s163 + $0x10] sm:$0xff] %v200
        %228 = vst [vmem:[%s163 + $0x18] sm:$0xff] %v223
        %s229 = sand.u32 %s68, 1
        %s230 = sand.u32 %s68, 1
        %s231 = smul.addr %s230, 32
        %s232 = scalar_lea.vmem [#allocation3], %s231
        // Predicated region
        $region52: #{dsv_forward.2} parent=46 // pred_check
          %p233 = pneg %p78
        $region53: #{dsv_forward.2} parent=46 // pred_check_branch
          %235 = sbr.rel (%p233) target = $region55
        $region54: #{dsv_forward.2} parent=46 // pred_region
          %s236 = smul.u32 2, %s13
          %s237 = smul.addr %s236, 8
          %s238 = scalar_lea.vmem %s2, %s237
          // Predicated region
          $region56: #{dsv_forward.2} parent=54 // pred_check
            _
          $region57: #{dsv_forward.2} parent=54 // pred_check_branch
            %240 = sbr.rel (0) target = $region59
          $region58: #{dsv_forward.2} parent=54 // pred_region
            // Predicated region
            $region60: #{dsv_forward.2} parent=58 // pred_check
              _
            $region61: #{dsv_forward.2} parent=58 // pred_check_branch
              %242 = sbr.rel (0) target = $region63
            $region62: #{dsv_forward.2} parent=58 // pred_region
              loop: start=0, step=1, limit=1
              $region64: #{dsv_forward.2} parent=62 // loop_pre_header
                _
              $region65: #{dsv_forward.2} parent=62 // loop_header
                %s244 = sphi 0, %s248
                %p245 = scmp.ge.s32.totalorder %s244, 1
                %s249 = sphi %s232, %s232
                %s250 = sphi %s238, %s238
              $region66: #{dsv_forward.2} parent=62 // loop_header_branch
                %247 = sbr.rel (%p245) target = $region70
              $region67: #{dsv_forward.2} parent=62 // loop_body
                %v251 = vld [vmem:[%s249] sm:$0xff]
                %252 = vst [vmem:[%s250] sm:$0xff] %v251
                %v253 = vld [vmem:[%s249 + $0x8] sm:$0xff]
                %254 = vst [vmem:[%s250 + $0x8] sm:$0xff] %v253
                %v255 = vld [vmem:[%s249 + $0x10] sm:$0xff]
                %256 = vst [vmem:[%s250 + $0x40] sm:$0xff] %v255
                %v257 = vld [vmem:[%s249 + $0x18] sm:$0xff]
                %258 = vst [vmem:[%s250 + $0x48] sm:$0xff] %v257
              $region68: #{dsv_forward.2} parent=62 // loop_footer
                %s248 = sadd.s32 1, %s244
              $region69: #{dsv_forward.2} parent=62 // loop_footer_branch
                %243 = sbr.rel target = $region65
              $region70: #{dsv_forward.2} parent=62 // loop_exit
                _
            $region63: #{dsv_forward.2} parent=58 // pred_fallthru
              _
            // Predicated region
            $region71: #{dsv_forward.2} parent=58 // pred_check
              _
            $region72: #{dsv_forward.2} parent=58 // pred_check_branch
              %260 = sbr.rel target = $region74
            $region73: #{dsv_forward.2} parent=58 // pred_region
              _
            $region74: #{dsv_forward.2} parent=58 // pred_fallthru
              _
          $region59: #{dsv_forward.2} parent=54 // pred_fallthru
            _
          %261 = vnop
        $region55: #{dsv_forward.2} parent=46 // pred_fallthru
          _
      $region47: #{dsv_forward.2} parent=5 // pred_fallthru
        _
      %p262 = scmp.le.s32.totalorder 2, %s8
      // Predicated region
      $region75: #{dsv_forward.2} parent=5 // pred_check
        %p263 = pneg %p262
      $region76: #{dsv_forward.2} parent=5 // pred_check_branch
        %265 = sbr.rel (%p263) target = $region78
      $region77: #{dsv_forward.2} parent=5 // pred_region
        %s266 = ssub.s32 %s8, 2
        // Predicated region
        $region79: #{dsv_forward.2} parent=77 // pred_check
          %p267 = pneg %p84
        $region80: #{dsv_forward.2} parent=77 // pred_check_branch
          %269 = sbr.rel (%p267) target = $region82
        $region81: #{dsv_forward.2} parent=77 // pred_region
          %s270 = sand.u32 %s69, 1
          %s271 = sand.u32 %s69, 1
          %s272 = smul.addr %s271, 32
          %s273 = scalar_lea.vmem [#allocation3], %s272
        $region82: #{dsv_forward.2} parent=77 // pred_fallthru
          _
      $region78: #{dsv_forward.2} parent=5 // pred_fallthru
        _
    $region6: #{dsv_forward.2} parent=1 // loop_footer
      %s12 = sadd.s32 1, %s8
    $region7: #{dsv_forward.2} parent=1 // loop_footer_branch
      %7 = sbr.rel target = $region3
    $region8: #{dsv_forward.2} parent=1 // loop_exit
      _

// kernel: dsv_forward.3
$region0: #{dsv_forward.3}
  #allocation0 [shape = 'u32[]', space=smem, size = 0x4, offset = 0x4, fixed_abs, tag = 'smem constant byte address 0x4 - core index']
  #allocation1 [shape = 'u32[72,128]{1,0:T(1,128)}', space=vmem, size = 0x9000, scoped, tag = 'internal scratch']
  %s0 = inlined_call_operand.vmem [shape: f32[2,32], index: 0, kind: input, shape index: {}]
  %s1 = inlined_call_operand.vmem [shape: f32[2,1], index: 1, kind: input, shape index: {}]
  %s2 = inlined_call_operand.vmem [shape: f32[2,32,4096], index: 2, kind: input, shape index: {}]
  %s3 = inlined_call_operand.vmem [shape: f32[2,2,4096], index: 3, kind: input, shape index: {}]
  %s4 = inlined_call_operand.vmem [shape: f32[2,2,4096], index: 4, kind: output, shape index: {}]
  %s5 = sld [smem:[#allocation0]]
  $region72: #{dsv_forward.3} parent=0
    _
  %s7 = ssub.s32 1, %s5
  %s8 = scalar_select 0, %s7, %s5
  $region1: #{dsv_forward.3} parent=0
    #allocation2 [shape = 'u8[262144]{0}', space=vmem, size = 0x40000, scoped, tag = 'input window, operand 2']
    loop: start=0, step=1, limit=10
    $region2: #{dsv_forward.3} parent=1 // loop_pre_header
      _
    $region3: #{dsv_forward.3} parent=1 // loop_header
      %s10 = sphi 0, %s14
      %p11 = scmp.ge.s32.totalorder %s10, 10
      %s17 = sphi 0, %s29
      %s18 = sphi 0, %s25
      %s19 = sphi 0, %s17
      %s20 = sphi 0, %s18
      %s21 = sphi 0, %s19
      %s22 = sphi 0, %s20
      %s30 = sphi 0, %s30
      %s32 = sphi 0, %s30
      %s33 = sphi 0, %s32
      %s47 = sphi 0, %s33
      %s51 = sphi 0, %s51
      %s53 = sphi 0, %s51
      %s54 = sphi 0, %s53
      %s68 = sphi 0, %s54
      %s76 = sphi 0, %s78
      %s79 = sphi 0, %s76
      %s80 = sphi 0, %s79
      %s96 = sphi 0, %s80
      %s104 = sphi 0, %s106
      %s107 = sphi 0, %s104
      %s108 = sphi 0, %s107
      %s124 = sphi 0, %s108
      %s132 = sphi 0, %s134
      %s135 = sphi 0, %s132
      %s136 = sphi 0, %s135
      %s152 = sphi 0, %s136
    $region4: #{dsv_forward.3} parent=1 // loop_header_branch
      %13 = sbr.rel (%p11) target = $region8
    $region5: #{dsv_forward.3} parent=1 // loop_body
      %s15 = ssub.s32 %s10, 1
      %s16 = ssub.s32 %s10, 2
      %s23 = sadd.s32 1, %s18
      %p24 = scmp.ge.s32.totalorder %s23, 4
      %s25 = scalar_select %p24, 0, %s23
      %s26 = sadd.s32 1, %s17
      %s27 = scalar_select %p24, %s26, %s17
      %p28 = scmp.ge.s32.totalorder %s27, 2
      %s29 = scalar_select %p28, 0, %s27
      %s31 = sadd.s32 %s30, 1
      %p34 = scmp.eq.s32.totalorder %s10, 7
      %p35 = scmp.ne.s32.totalorder %s30, %s32
      %p36 = scmp.eq.s32.totalorder %s10, 0
      %p37 = por %p35, %p36
      %p38 = scmp.ne.s32.totalorder %s30, %s32
      %p39 = scmp.eq.s32.totalorder %s15, 7
      %p40 = por %p38, %p39
      %p41 = scmp.ne.s32.totalorder %s32, %s33
      %p42 = scmp.eq.s32.totalorder %s15, 0
      %p43 = por %p41, %p42
      %p44 = scmp.ne.s32.totalorder %s32, %s33
      %p45 = scmp.eq.s32.totalorder %s16, 7
      %p46 = por %p44, %p45
      %p48 = scmp.ne.s32.totalorder %s33, %s47
      %p49 = scmp.eq.s32.totalorder %s16, 0
      %p50 = por %p48, %p49
      %s52 = sadd.s32 %s51, 1
      %p55 = scmp.eq.s32.totalorder %s10, 7
      %p56 = scmp.ne.s32.totalorder %s51, %s53
      %p57 = scmp.eq.s32.totalorder %s10, 0
      %p58 = por %p56, %p57
      %p59 = scmp.ne.s32.totalorder %s51, %s53
      %p60 = scmp.eq.s32.totalorder %s15, 7
      %p61 = por %p59, %p60
      %p62 = scmp.ne.s32.totalorder %s53, %s54
      %p63 = scmp.eq.s32.totalorder %s15, 0
      %p64 = por %p62, %p63
      %p65 = scmp.ne.s32.totalorder %s53, %s54
      %p66 = scmp.eq.s32.totalorder %s16, 7
      %p67 = por %p65, %p66
      %p69 = scmp.ne.s32.totalorder %s54, %s68
      %p70 = scmp.eq.s32.totalorder %s16, 0
      %p71 = por %p69, %p70
      %s72 = ssub.s32 %s17, %s29
      %s73 = ssub.s32 %s18, %s25
      %s74 = sor.u32 %s72, %s73
      %p75 = scmp.eq.s32.totalorder %s74, 0
      %s77 = sadd.s32 %s76, 1
      %s78 = scalar_select %p75, %s76, %s77
      %p81 = pneg %p75
      %p82 = scmp.eq.s32.totalorder %s10, 7
      %p83 = por %p81, %p82
      %p84 = scmp.ne.s32.totalorder %s76, %s79
      %p85 = scmp.eq.s32.totalorder %s10, 0
      %p86 = por %p84, %p85
      %p87 = scmp.ne.s32.totalorder %s76, %s79
      %p88 = scmp.eq.s32.totalorder %s15, 7
      %p89 = por %p87, %p88
      %p90 = scmp.ne.s32.totalorder %s79, %s80
      %p91 = scmp.eq.s32.totalorder %s15, 0
      %p92 = por %p90, %p91
      %p93 = scmp.ne.s32.totalorder %s79, %s80
      %p94 = scmp.eq.s32.totalorder %s16, 7
      %p95 = por %p93, %p94
      %p97 = scmp.ne.s32.totalorder %s80, %s96
      %p98 = scmp.eq.s32.totalorder %s16, 0
      %p99 = por %p97, %p98
      %s100 = ssub.s32 %s17, %s29
      %s101 = ssub.s32 %s18, %s25
      %s102 = sor.u32 %s100, %s101
      %p103 = scmp.eq.s32.totalorder %s102, 0
      %s105 = sadd.s32 %s104, 1
      %s106 = scalar_select %p103, %s104, %s105
      %p109 = pneg %p103
      %p110 = scmp.eq.s32.totalorder %s10, 7
      %p111 = por %p109, %p110
      %p112 = scmp.ne.s32.totalorder %s104, %s107
      %p113 = scmp.eq.s32.totalorder %s10, 0
      %p114 = por %p112, %p113
      %p115 = scmp.ne.s32.totalorder %s104, %s107
      %p116 = scmp.eq.s32.totalorder %s15, 7
      %p117 = por %p115, %p116
      %p118 = scmp.ne.s32.totalorder %s107, %s108
      %p119 = scmp.eq.s32.totalorder %s15, 0
      %p120 = por %p118, %p119
      %p121 = scmp.ne.s32.totalorder %s107, %s108
      %p122 = scmp.eq.s32.totalorder %s16, 7
      %p123 = por %p121, %p122
      %p125 = scmp.ne.s32.totalorder %s108, %s124
      %p126 = scmp.eq.s32.totalorder %s16, 0
      %p127 = por %p125, %p126
      %s128 = ssub.s32 %s17, %s29
      %s129 = ssub.s32 %s18, %s25
      %s130 = sor.u32 %s128, %s129
      %p131 = scmp.eq.s32.totalorder %s130, 0
      %s133 = sadd.s32 %s132, 1
      %s134 = scalar_select %p131, %s132, %s133
      %p137 = pneg %p131
      %p138 = scmp.eq.s32.totalorder %s10, 7
      %p139 = por %p137, %p138
      %p140 = scmp.ne.s32.totalorder %s132, %s135
      %p141 = scmp.eq.s32.totalorder %s10, 0
      %p142 = por %p140, %p141
      %p143 = scmp.ne.s32.totalorder %s132, %s135
      %p144 = scmp.eq.s32.totalorder %s15, 7
      %p145 = por %p143, %p144
      %p146 = scmp.ne.s32.totalorder %s135, %s136
      %p147 = scmp.eq.s32.totalorder %s15, 0
      %p148 = por %p146, %p147
      %p149 = scmp.ne.s32.totalorder %s135, %s136
      %p150 = scmp.eq.s32.totalorder %s16, 7
      %p151 = por %p149, %p150
      %p153 = scmp.ne.s32.totalorder %s136, %s152
      %p154 = scmp.eq.s32.totalorder %s16, 0
      %p155 = por %p153, %p154
      %p156 = scmp.le.s32.totalorder 1, %s10
      %p157 = scmp.lt.s32.totalorder %s10, 9
      %p158 = pnand %p156, %p157
      %p159 = pneg %p158
      // Predicated region
      $region9: #{dsv_forward.3} parent=5 // pred_check
        _
      $region10: #{dsv_forward.3} parent=5 // pred_check_branch
        %161 = sbr.rel (%p158) target = $region12
      $region11: #{dsv_forward.3} parent=5 // pred_region
        %s162 = ssub.s32 %s10, 1
        // Predicated region
        $region13: #{dsv_forward.3} parent=11 // pred_check
          %p163 = pneg %p43
        $region14: #{dsv_forward.3} parent=11 // pred_check_branch
          %165 = sbr.rel (%p163) target = $region16
        $region15: #{dsv_forward.3} parent=11 // pred_region
          _
        $region16: #{dsv_forward.3} parent=11 // pred_fallthru
          _
        // Predicated region
        $region17: #{dsv_forward.3} parent=11 // pred_check
          %p166 = pneg %p64
        $region18: #{dsv_forward.3} parent=11 // pred_check_branch
          %168 = sbr.rel (%p166) target = $region20
        $region19: #{dsv_forward.3} parent=11 // pred_region
          _
        $region20: #{dsv_forward.3} parent=11 // pred_fallthru
          _
      $region12: #{dsv_forward.3} parent=5 // pred_fallthru
        _
      %p169 = scmp.lt.s32.totalorder %s10, 8
      // Predicated region
      $region21: #{dsv_forward.3} parent=5 // pred_check
        %p170 = pneg %p169
      $region22: #{dsv_forward.3} parent=5 // pred_check_branch
        %172 = sbr.rel (%p170) target = $region24
      $region23: #{dsv_forward.3} parent=5 // pred_region
        // Predicated region
        $region25: #{dsv_forward.3} parent=23 // pred_check
          %p173 = pneg %p86
        $region26: #{dsv_forward.3} parent=23 // pred_check_branch
          %175 = sbr.rel (%p173) target = $region28
        $region27: #{dsv_forward.3} parent=23 // pred_region
          %s176 = sand.u32 %s76, 1
          %s177 = sand.u32 %s76, 1
          %s178 = smul.addr %s177, 256
          %s179 = scalar_lea.vmem [#allocation2], %s178
          %s180 = smul.u32 8, %s18
          %s181 = smul.addr %s17, 128
          %s182 = sadd.s32 %s180, %s181
          %s183 = smul.addr %s182, 8
          %s184 = scalar_lea.vmem %s2, %s183
          // Predicated region
          $region29: #{dsv_forward.3} parent=27 // pred_check
            _
          $region30: #{dsv_forward.3} parent=27 // pred_check_branch
            %186 = sbr.rel (0) target = $region32
          $region31: #{dsv_forward.3} parent=27 // pred_region
            // Predicated region
            $region33: #{dsv_forward.3} parent=31 // pred_check
              _
            $region34: #{dsv_forward.3} parent=31 // pred_check_branch
              %188 = sbr.rel (0) target = $region36
            $region35: #{dsv_forward.3} parent=31 // pred_region
              loop: start=0, step=1, limit=1
              $region37: #{dsv_forward.3} parent=35 // loop_pre_header
                _
              $region38: #{dsv_forward.3} parent=35 // loop_header
                %s190 = sphi 0, %s194
                %p191 = scmp.ge.s32.totalorder %s190, 1
                %s195 = sphi %s184, %s184
                %s196 = sphi %s179, %s179
              $region39: #{dsv_forward.3} parent=35 // loop_header_branch
                %193 = sbr.rel (%p191) target = $region43
              $region40: #{dsv_forward.3} parent=35 // loop_body
                %v197 = vld [vmem:[%s195] sm:$0xff]
                %198 = vst [vmem:[%s196] sm:$0xff] %v197
                %v199 = vld [vmem:[%s195 + $0x8] sm:$0xff]
                %200 = vst [vmem:[%s196 + $0x8] sm:$0xff] %v199
                %v201 = vld [vmem:[%s195 + $0x10] sm:$0xff]
                %202 = vst [vmem:[%s196 + $0x10] sm:$0xff] %v201
                %v203 = vld [vmem:[%s195 + $0x18] sm:$0xff]
                %204 = vst [vmem:[%s196 + $0x18] sm:$0xff] %v203
                %v205 = vld [vmem:[%s195 + $0x20] sm:$0xff]
                %206 = vst [vmem:[%s196 + $0x20] sm:$0xff] %v205
                %v207 = vld [vmem:[%s195 + $0x28] sm:$0xff]
                %208 = vst [vmem:[%s196 + $0x28] sm:$0xff] %v207
                %v209 = vld [vmem:[%s195 + $0x30] sm:$0xff]
                %210 = vst [vmem:[%s196 + $0x30] sm:$0xff] %v209
                %v211 = vld [vmem:[%s195 + $0x38] sm:$0xff]
                %212 = vst [vmem:[%s196 + $0x38] sm:$0xff] %v211
                %v213 = vld [vmem:[%s195 + $0x100] sm:$0xff]
                %214 = vst [vmem:[%s196 + $0x40] sm:$0xff] %v213
                %v215 = vld [vmem:[%s195 + $0x108] sm:$0xff]
                %216 = vst [vmem:[%s196 + $0x48] sm:$0xff] %v215
                %v217 = vld [vmem:[%s195 + $0x110] sm:$0xff]
                %218 = vst [vmem:[%s196 + $0x50] sm:$0xff] %v217
                %v219 = vld [vmem:[%s195 + $0x118] sm:$0xff]
                %220 = vst [vmem:[%s196 + $0x58] sm:$0xff] %v219
                %v221 = vld [vmem:[%s195 + $0x120] sm:$0xff]
                %222 = vst [vmem:[%s196 + $0x60] sm:$0xff] %v221
                %v223 = vld [vmem:[%s195 + $0x128] sm:$0xff]
                %224 = vst [vmem:[%s196 + $0x68] sm:$0xff] %v223
                %v225 = vld [vmem:[%s195 + $0x130] sm:$0xff]
                %226 = vst [vmem:[%s196 + $0x70] sm:$0xff] %v225
                %v227 = vld [vmem:[%s195 + $0x138] sm:$0xff]
                %228 = vst [vmem:[%s196 + $0x78] sm:$0xff] %v227
                %v229 = vld [vmem:[%s195 + $0x200] sm:$0xff]
                %230 = vst [vmem:[%s196 + $0x80] sm:$0xff] %v229
                %v231 = vld [vmem:[%s195 + $0x208] sm:$0xff]
                %232 = vst [vmem:[%s196 + $0x88] sm:$0xff] %v231
                %v233 = vld [vmem:[%s195 + $0x210] sm:$0xff]
                %234 = vst [vmem:[%s196 + $0x90] sm:$0xff] %v233
                %v235 = vld [vmem:[%s195 + $0x218] sm:$0xff]
                %236 = vst [vmem:[%s196 + $0x98] sm:$0xff] %v235
                %v237 = vld [vmem:[%s195 + $0x220] sm:$0xff]
                %238 = vst [vmem:[%s196 + $0xa0] sm:$0xff] %v237
                %v239 = vld [vmem:[%s195 + $0x228] sm:$0xff]
                %240 = vst [vmem:[%s196 + $0xa8] sm:$0xff] %v239
                %v241 = vld [vmem:[%s195 + $0x230] sm:$0xff]
                %242 = vst [vmem:[%s196 + $0xb0] sm:$0xff] %v241
                %v243 = vld [vmem:[%s195 + $0x238] sm:$0xff]
                %244 = vst [vmem:[%s196 + $0xb8] sm:$0xff] %v243
                %v245 = vld [vmem:[%s195 + $0x300] sm:$0xff]
                %246 = vst [vmem:[%s196 + $0xc0] sm:$0xff] %v245
                %v247 = vld [vmem:[%s195 + $0x308] sm:$0xff]
                %248 = vst [vmem:[%s196 + $0xc8] sm:$0xff] %v247
                %v249 = vld [vmem:[%s195 + $0x310] sm:$0xff]
                %250 = vst [vmem:[%s196 + $0xd0] sm:$0xff] %v249
                %v251 = vld [vmem:[%s195 + $0x318] sm:$0xff]
                %252 = vst [vmem:[%s196 + $0xd8] sm:$0xff] %v251
                %v253 = vld [vmem:[%s195 + $0x320] sm:$0xff]
                %254 = vst [vmem:[%s196 + $0xe0] sm:$0xff] %v253
                %v255 = vld [vmem:[%s195 + $0x328] sm:$0xff]
                %256 = vst [vmem:[%s196 + $0xe8] sm:$0xff] %v255
                %v257 = vld [vmem:[%s195 + $0x330] sm:$0xff]
                %258 = vst [vmem:[%s196 + $0xf0] sm:$0xff] %v257
                %v259 = vld [vmem:[%s195 + $0x338] sm:$0xff]
                %260 = vst [vmem:[%s196 + $0xf8] sm:$0xff] %v259
              $region41: #{dsv_forward.3} parent=35 // loop_footer
                %s194 = sadd.s32 1, %s190
              $region42: #{dsv_forward.3} parent=35 // loop_footer_branch
                %189 = sbr.rel target = $region38
              $region43: #{dsv_forward.3} parent=35 // loop_exit
                _
            $region36: #{dsv_forward.3} parent=31 // pred_fallthru
              _
            // Predicated region
            $region44: #{dsv_forward.3} parent=31 // pred_check
              _
            $region45: #{dsv_forward.3} parent=31 // pred_check_branch
              %262 = sbr.rel target = $region47
            $region46: #{dsv_forward.3} parent=31 // pred_region
              _
            $region47: #{dsv_forward.3} parent=31 // pred_fallthru
              _
          $region32: #{dsv_forward.3} parent=27 // pred_fallthru
            _
          %263 = vnop
        $region28: #{dsv_forward.3} parent=23 // pred_fallthru
          _
        // Predicated region
        $region48: #{dsv_forward.3} parent=23 // pred_check
          %p264 = pneg %p114
        $region49: #{dsv_forward.3} parent=23 // pred_check_branch
          %266 = sbr.rel (%p264) target = $region51
        $region50: #{dsv_forward.3} parent=23 // pred_region
          %s267 = smul.u32 8, %s18
          %p268 = scmp.lt.s32.totalorder %s17, 1
          %s269 = scalar_select %p268, %s17, 1
          %p270 = scmp.lt.s32.totalorder %s267, 31
          %s271 = scalar_select %p270, %s267, 31
          %s272 = smul.addr %s269, 32
          %s273 = sadd.s32 %s271, %s272
          %s274 = smul.addr %s273, 2
          %s275 = scalar_lea.vmem %s3, %s274
          %s276 = smul.u32 8, %s18
        $region51: #{dsv_forward.3} parent=23 // pred_fallthru
          _
      $region24: #{dsv_forward.3} parent=5 // pred_fallthru
        _
      %p277 = scmp.le.s32.totalorder 1, %s10
      %p278 = scmp.lt.s32.totalorder %s10, 9
      %p279 = pnand %p277, %p278
      %p280 = pneg %p279
      // Predicated region
      $region52: #{dsv_forward.3} parent=5 // pred_check
        _
      $region53: #{dsv_forward.3} parent=5 // pred_check_branch
        %282 = sbr.rel (%p279) target = $region55
      $region54: #{dsv_forward.3} parent=5 // pred_region
        %s283 = ssub.s32 %s10, 1
        %s284 = sand.u32 %s79, 1
        %s285 = sand.u32 %s79, 1
        %s286 = smul.addr %s285, 256
        %s287 = scalar_lea.vmem [#allocation2], %s286
        // Predicated region
        $region56: #{dsv_forward.3} parent=54 // pred_check
          %p288 = pneg %p92
        $region57: #{dsv_forward.3} parent=54 // pred_check_branch
          %290 = sbr.rel (%p288) target = $region59
        $region58: #{dsv_forward.3} parent=54 // pred_region
          _
        $region59: #{dsv_forward.3} parent=54 // pred_fallthru
          _
        %p291 = pneg %p43
        %p292 = pneg %p40
        %p293 = pneg %p64
        %p294 = pneg %p61
        %s295 = sand.u32 %s79, 1
        %s296 = sand.u32 %s79, 1
        %s297 = smul.addr %s296, 256
        %s298 = scalar_lea.vmem [#allocation2], %s297
        %p299 = pneg %p92
        %p300 = pneg %p89
        %s301 = smul.u32 8, %s20
        %p302 = scmp.lt.s32.totalorder %s19, 1
        %s303 = scalar_select %p302, %s19, 1
        %p304 = scmp.lt.s32.totalorder %s301, 31
        %s305 = scalar_select %p304, %s301, 31
        %s306 = smul.addr %s303, 32
        %s307 = sadd.s32 %s305, %s306
        %s308 = smul.addr %s307, 2
        %s309 = scalar_lea.vmem %s3, %s308
        %p310 = pneg %p120
        %p311 = pneg %p117
        %p312 = pneg %p148
        %p313 = pneg %p145
        %s314 = smul.u32 8, %s20
        %p315 = scmp.lt.s32.totalorder %s19, 1
        %s316 = scalar_select %p315, %s19, 1
        %p317 = scmp.lt.s32.totalorder %s314, 31
        %s318 = scalar_select %p317, %s314, 31
        %s319 = smul.addr %s316, 32
        %s320 = sadd.s32 %s318, %s319
        %s321 = smul.addr %s320, 2
        %s322 = scalar_lea.vmem %s4, %s321
        %s323 = smul.u32 8, %s20
        %s324 = smul.u32 8, %s20
        %p325 = scmp.lt.s32.totalorder %s19, 1
        %s326 = scalar_select %p325, %s19, 1
        %p327 = scmp.lt.s32.totalorder %s324, 31
        %s328 = scalar_select %p327, %s324, 31
        %s329 = smul.addr %s326, 32
        %s330 = sadd.s32 %s328, %s329
        %s331 = smul.addr %s330, 2
        %s332 = scalar_lea.vmem %s3, %s331
        %s333 = smul.u32 8, %s20
        %s334 = smul.u32 8, %s20
        %p335 = scmp.lt.s32.totalorder %s19, 1
        %s336 = scalar_select %p335, %s19, 1
        %p337 = scmp.lt.s32.totalorder %s334, 31
        %s338 = scalar_select %p337, %s334, 31
        %s339 = smul.addr %s336, 32
        %s340 = sadd.s32 %s338, %s339
        %s341 = smul.addr %s340, 2
        %s342 = scalar_lea.vmem %s4, %s341
        %s343 = smul.u32 8, %s20
        %v344 = vld [vmem:[%s0] sm:$0x3]
        %v345 = vld [vmem:[%s287] sm:$0xff]
        %v346 = vld [vmem:[%s287 + $0x8] sm:$0xff]
        %v347 = vld [vmem:[%s287 + $0x10] sm:$0xff]
        %v348 = vld [vmem:[%s287 + $0x18] sm:$0xff]
        %v349 = vld [vmem:[%s287 + $0x20] sm:$0xff]
        %v350 = vld [vmem:[%s287 + $0x28] sm:$0xff]
        %v351 = vld [vmem:[%s287 + $0x30] sm:$0xff]
        %v352 = vld [vmem:[%s287 + $0x38] sm:$0xff]
        %v353 = vld [vmem:[%s287 + $0x40] sm:$0xff]
        %v354 = vld [vmem:[%s287 + $0x48] sm:$0xff]
        %v355 = vld [vmem:[%s287 + $0x50] sm:$0xff]
        %v356 = vld [vmem:[%s287 + $0x58] sm:$0xff]
        %v357 = vld [vmem:[%s287 + $0x60] sm:$0xff]
        %v358 = vld [vmem:[%s287 + $0x68] sm:$0xff]
        %v359 = vld [vmem:[%s287 + $0x70] sm:$0xff]
        %v360 = vld [vmem:[%s287 + $0x78] sm:$0xff]
        %v361 = vld [vmem:[%s287 + $0x80] sm:$0xff]
        %v362 = vld [vmem:[%s287 + $0x88] sm:$0xff]
        %v363 = vld [vmem:[%s287 + $0x90] sm:$0xff]
        %v364 = vld [vmem:[%s287 + $0x98] sm:$0xff]
        %v365 = vld [vmem:[%s287 + $0xa0] sm:$0xff]
        %v366 = vld [vmem:[%s287 + $0xa8] sm:$0xff]
        %v367 = vld [vmem:[%s287 + $0xb0] sm:$0xff]
        %v368 = vld [vmem:[%s287 + $0xb8] sm:$0xff]
        %v369 = vld [vmem:[%s287 + $0xc0] sm:$0xff]
        %v370 = vld [vmem:[%s287 + $0xc8] sm:$0xff]
        %v371 = vld [vmem:[%s287 + $0xd0] sm:$0xff]
        %v372 = vld [vmem:[%s287 + $0xd8] sm:$0xff]
        %v373 = vld [vmem:[%s287 + $0xe0] sm:$0xff]
        %v374 = vld [vmem:[%s287 + $0xe8] sm:$0xff]
        %v375 = vld [vmem:[%s287 + $0xf0] sm:$0xff]
        %v376 = vld [vmem:[%s287 + $0xf8] sm:$0xff]
        %v377 = vld [vmem:[%s332] sm:$0xff]
        %v378 = vld [vmem:[%s332 + $0x8] sm:$0xff]
        %381 = vst [vmem:[#allocation1] ss:$4 sm:$0xff] %v377
        %s382 = scalar_lea.vmem [#allocation1], 32
        %383 = vst [vmem:[%s382] ss:$4 sm:$0xff] %v378
        %v384 = vld.sshfl [vmem:[#allocation1] sm:$0xff pattern:$0x73625140]
        %v385 = vld.sshfl [vmem:[#allocation1 + $0x8] sm:$0xff pattern:$0x73625140]
        %v386 = vld.sshfl [vmem:[#allocation1 + $0x10] sm:$0xff pattern:$0x73625140]
        %v387 = vld.sshfl [vmem:[#allocation1 + $0x18] sm:$0xff pattern:$0x73625140]
        %v388 = vld.sshfl [vmem:[#allocation1 + $0x20] sm:$0xff pattern:$0x73625140]
        %v389 = vld.sshfl [vmem:[#allocation1 + $0x28] sm:$0xff pattern:$0x73625140]
        %v390 = vld.sshfl [vmem:[#allocation1 + $0x30] sm:$0xff pattern:$0x73625140]
        %v391 = vld.sshfl [vmem:[#allocation1 + $0x38] sm:$0xff pattern:$0x73625140]
        %vm400 = vcmask 261120
        %v402 = vsel %vm400, %v344, 0
        %404 = vmatpush.msra.mxu0 0.0
        %405 = vmatpush.msra.mxu0 0.0
        %406 = vmatpush.msra.mxu0 0.0
        %407 = vmatpush.msra.mxu0 0.0
        %408 = vmatpush.msra.mxu0 0.0
        %409 = vmatpush.msra.mxu0 0.0
        %410 = vmatpush.msra.mxu0 0.0
        %411 = vmatpush.msra.mxu0 0.0
        %412 = vmatpush.msra.mxu0 0.0
        %413 = vmatpush.msra.mxu0 0.0
        %414 = vmatpush.msra.mxu0 0.0
        %415 = vmatpush.msra.mxu0 0.0
        %416 = vmatpush.msra.mxu0 %v369
        %417 = vmatpush.msra.mxu0 %v361
        %418 = vmatpush.msra.mxu0 %v353
        %419 = vmatpush.msra.mxu0 %v345
        %420 = vmatmul.f32.gmra.mxu0 %v402
        %v421 = vpop.f32.mrf.mxu0
        %v422 = vadd.f32 %v384, %v421
        %423 = vdwg.mxu0
        %424 = vmatpush.msra.mxu0 0.0
        %425 = vmatpush.msra.mxu0 0.0
        %426 = vmatpush.msra.mxu0 0.0
        %427 = vmatpush.msra.mxu0 0.0
        %428 = vmatpush.msra.mxu0 0.0
        %429 = vmatpush.msra.mxu0 0.0
        %430 = vmatpush.msra.mxu0 0.0
        %431 = vmatpush.msra.mxu0 0.0
        %432 = vmatpush.msra.mxu0 0.0
        %433 = vmatpush.msra.mxu0 0.0
        %434 = vmatpush.msra.mxu0 0.0
        %435 = vmatpush.msra.mxu0 0.0
        %436 = vmatpush.msra.mxu0 %v370
        %437 = vmatpush.msra.mxu0 %v362
        %438 = vmatpush.msra.mxu0 %v354
        %439 = vmatpush.msra.mxu0 %v346
        %440 = vmatmul.f32.gmra.mxu0 %v402
        %v441 = vpop.f32.mrf.mxu0
        %v442 = vadd.f32 %v385, %v441
        %443 = vdwg.mxu0
        %444 = vmatpush.msra.mxu0 0.0
        %445 = vmatpush.msra.mxu0 0.0
        %446 = vmatpush.msra.mxu0 0.0
        %447 = vmatpush.msra.mxu0 0.0
        %448 = vmatpush.msra.mxu0 0.0
        %449 = vmatpush.msra.mxu0 0.0
        %450 = vmatpush.msra.mxu0 0.0
        %451 = vmatpush.msra.mxu0 0.0
        %452 = vmatpush.msra.mxu0 0.0
        %453 = vmatpush.msra.mxu0 0.0
        %454 = vmatpush.msra.mxu0 0.0
        %455 = vmatpush.msra.mxu0 0.0
        %456 = vmatpush.msra.mxu0 %v371
        %457 = vmatpush.msra.mxu0 %v363
        %458 = vmatpush.msra.mxu0 %v355
        %459 = vmatpush.msra.mxu0 %v347
        %460 = vmatmul.f32.gmra.mxu0 %v402
        %v461 = vpop.f32.mrf.mxu0
        %v462 = vadd.f32 %v386, %v461
        %463 = vdwg.mxu0
        %464 = vmatpush.msra.mxu0 0.0
        %465 = vmatpush.msra.mxu0 0.0
        %466 = vmatpush.msra.mxu0 0.0
        %467 = vmatpush.msra.mxu0 0.0
        %468 = vmatpush.msra.mxu0 0.0
        %469 = vmatpush.msra.mxu0 0.0
        %470 = vmatpush.msra.mxu0 0.0
        %471 = vmatpush.msra.mxu0 0.0
        %472 = vmatpush.msra.mxu0 0.0
        %473 = vmatpush.msra.mxu0 0.0
        %474 = vmatpush.msra.mxu0 0.0
        %475 = vmatpush.msra.mxu0 0.0
        %476 = vmatpush.msra.mxu0 %v372
        %477 = vmatpush.msra.mxu0 %v364
        %478 = vmatpush.msra.mxu0 %v356
        %479 = vmatpush.msra.mxu0 %v348
        %480 = vmatmul.f32.gmra.mxu0 %v402
        %v481 = vpop.f32.mrf.mxu0
        %v482 = vadd.f32 %v387, %v481
        %483 = vdwg.mxu0
        %484 = vmatpush.msra.mxu0 0.0
        %485 = vmatpush.msra.mxu0 0.0
        %486 = vmatpush.msra.mxu0 0.0
        %487 = vmatpush.msra.mxu0 0.0
        %488 = vmatpush.msra.mxu0 0.0
        %489 = vmatpush.msra.mxu0 0.0
        %490 = vmatpush.msra.mxu0 0.0
        %491 = vmatpush.msra.mxu0 0.0
        %492 = vmatpush.msra.mxu0 0.0
        %493 = vmatpush.msra.mxu0 0.0
        %494 = vmatpush.msra.mxu0 0.0
        %495 = vmatpush.msra.mxu0 0.0
        %496 = vmatpush.msra.mxu0 %v373
        %497 = vmatpush.msra.mxu0 %v365
        %498 = vmatpush.msra.mxu0 %v357
        %499 = vmatpush.msra.mxu0 %v349
        %500 = vmatmul.f32.gmra.mxu0 %v402
        %v501 = vpop.f32.mrf.mxu0
        %v502 = vadd.f32 %v388, %v501
        %503 = vdwg.mxu0
        %504 = vmatpush.msra.mxu0 0.0
        %505 = vmatpush.msra.mxu0 0.0
        %506 = vmatpush.msra.mxu0 0.0
        %507 = vmatpush.msra.mxu0 0.0
        %508 = vmatpush.msra.mxu0 0.0
        %509 = vmatpush.msra.mxu0 0.0
        %510 = vmatpush.msra.mxu0 0.0
        %511 = vmatpush.msra.mxu0 0.0
        %512 = vmatpush.msra.mxu0 0.0
        %513 = vmatpush.msra.mxu0 0.0
        %514 = vmatpush.msra.mxu0 0.0
        %515 = vmatpush.msra.mxu0 0.0
        %516 = vmatpush.msra.mxu0 %v374
        %517 = vmatpush.msra.mxu0 %v366
        %518 = vmatpush.msra.mxu0 %v358
        %519 = vmatpush.msra.mxu0 %v350
        %520 = vmatmul.f32.gmra.mxu0 %v402
        %v521 = vpop.f32.mrf.mxu0
        %v522 = vadd.f32 %v389, %v521
        %523 = vdwg.mxu0
        %524 = vmatpush.msra.mxu0 0.0
        %525 = vmatpush.msra.mxu0 0.0
        %526 = vmatpush.msra.mxu0 0.0
        %527 = vmatpush.msra.mxu0 0.0
        %528 = vmatpush.msra.mxu0 0.0
        %529 = vmatpush.msra.mxu0 0.0
        %530 = vmatpush.msra.mxu0 0.0
        %531 = vmatpush.msra.mxu0 0.0
        %532 = vmatpush.msra.mxu0 0.0
        %533 = vmatpush.msra.mxu0 0.0
        %534 = vmatpush.msra.mxu0 0.0
        %535 = vmatpush.msra.mxu0 0.0
        %536 = vmatpush.msra.mxu0 %v375
        %537 = vmatpush.msra.mxu0 %v367
        %538 = vmatpush.msra.mxu0 %v359
        %539 = vmatpush.msra.mxu0 %v351
        %540 = vmatmul.f32.gmra.mxu0 %v402
        %v541 = vpop.f32.mrf.mxu0
        %v542 = vadd.f32 %v390, %v541
        %543 = vdwg.mxu0
        %544 = vmatpush.msra.mxu0 0.0
        %545 = vmatpush.msra.mxu0 0.0
        %546 = vmatpush.msra.mxu0 0.0
        %547 = vmatpush.msra.mxu0 0.0
        %548 = vmatpush.msra.mxu0 0.0
        %549 = vmatpush.msra.mxu0 0.0
        %550 = vmatpush.msra.mxu0 0.0
        %551 = vmatpush.msra.mxu0 0.0
        %552 = vmatpush.msra.mxu0 0.0
        %553 = vmatpush.msra.mxu0 0.0
        %554 = vmatpush.msra.mxu0 0.0
        %555 = vmatpush.msra.mxu0 0.0
        %556 = vmatpush.msra.mxu0 %v376
        %557 = vmatpush.msra.mxu0 %v368
        %558 = vmatpush.msra.mxu0 %v360
        %559 = vmatpush.msra.mxu0 %v352
        %560 = vmatmul.f32.gmra.mxu0 %v402
        %v561 = vpop.f32.mrf.mxu0
        %v562 = vadd.f32 %v391, %v561
        %563 = vdwg.mxu0
        %v564 = vld [vmem:[%s1] sm:$0x3]
        %566 = vset.pattern.permute.xlu0 0
        %567 = vperm.xlu0 %566, %v564
        %v568 = vpop.permute.xlu0 %567
        %v570 = vadd.f32 %v422, %v568
        %v571 = vadd.f32 %v442, %v568
        %v572 = vadd.f32 %v462, %v568
        %v573 = vadd.f32 %v482, %v568
        %v574 = vadd.f32 %v502, %v568
        %v575 = vadd.f32 %v522, %v568
        %v576 = vadd.f32 %v542, %v568
        %v577 = vadd.f32 %v562, %v568
        %v586 = vrot.slane %v571, 6
        %v587 = vrot.slane %v572, 4
        %v588 = vrot.slane %v573, 2
        %v589 = vrot.slane %v575, 6
        %v590 = vrot.slane %v576, 4
        %v591 = vrot.slane %v577, 2
        %vm592 = vcmask 1041408
        %v593 = vsel %vm592, %v570, %v586
        %vm594 = vcmask 1045508
        %v595 = vsel %vm594, %v587, %v588
        %vm596 = vcmask 1043456
        %v597 = vsel %vm596, %v593, %v595
        %v598 = vsel %vm592, %v574, %v589
        %v599 = vsel %vm594, %v590, %v591
        %v600 = vsel %vm596, %v598, %v599
        %603 = vst [vmem:[%s342] sm:$0xff] %v597
        %604 = vst [vmem:[%s342 + $0x8] sm:$0xff] %v600
        %s605 = smul.u32 8, %s20
        %p606 = scmp.lt.s32.totalorder %s19, 1
        %s607 = scalar_select %p606, %s19, 1
        %p608 = scmp.lt.s32.totalorder %s605, 31
        %s609 = scalar_select %p608, %s605, 31
        %s610 = smul.addr %s607, 32
        %s611 = sadd.s32 %s609, %s610
        %s612 = smul.addr %s611, 2
        %s613 = scalar_lea.vmem %s4, %s612
        // Predicated region
        $region60: #{dsv_forward.3} parent=54 // pred_check
          %p614 = pneg %p145
        $region61: #{dsv_forward.3} parent=54 // pred_check_branch
          %616 = sbr.rel (%p614) target = $region63
        $region62: #{dsv_forward.3} parent=54 // pred_region
          %s617 = smul.u32 8, %s20
        $region63: #{dsv_forward.3} parent=54 // pred_fallthru
          _
      $region55: #{dsv_forward.3} parent=5 // pred_fallthru
        _
      %p618 = scmp.le.s32.totalorder 2, %s10
      // Predicated region
      $region64: #{dsv_forward.3} parent=5 // pred_check
        %p619 = pneg %p618
      $region65: #{dsv_forward.3} parent=5 // pred_check_branch
        %621 = sbr.rel (%p619) target = $region67
      $region66: #{dsv_forward.3} parent=5 // pred_region
        %s622 = ssub.s32 %s10, 2
        // Predicated region
        $region68: #{dsv_forward.3} parent=66 // pred_check
          %p623 = pneg %p151
        $region69: #{dsv_forward.3} parent=66 // pred_check_branch
          %625 = sbr.rel (%p623) target = $region71
        $region70: #{dsv_forward.3} parent=66 // pred_region
          %s626 = smul.u32 8, %s22
          %p627 = scmp.lt.s32.totalorder %s21, 1
          %s628 = scalar_select %p627, %s21, 1
          %p629 = scmp.lt.s32.totalorder %s626, 31
          %s630 = scalar_select %p629, %s626, 31
          %s631 = smul.addr %s628, 32
          %s632 = sadd.s32 %s630, %s631
          %s633 = smul.addr %s632, 2
          %s634 = scalar_lea.vmem %s4, %s633
        $region71: #{dsv_forward.3} parent=66 // pred_fallthru
          _
      $region67: #{dsv_forward.3} parent=5 // pred_fallthru
        _
    $region6: #{dsv_forward.3} parent=1 // loop_footer
      %s14 = sadd.s32 1, %s10
    $region7: #{dsv_forward.3} parent=1 // loop_footer_branch
      %9 = sbr.rel target = $region3
    $region8: #{dsv_forward.3} parent=1 // loop_exit
      _

</llo_original>
